<compile_context>
chip_gen: v7x
topology: tpu7x:2x2x1
jax: 0.10.0
libtpu: 0.0.40
codegen_flags: <defaults>
</compile_context>

<pallas_src>
import functools

import jax
import jax.numpy as jnp
import numpy as np
from jax import lax
from jax.experimental import pallas as pl
from jax.experimental.pallas import tpu as pltpu


# ---------------------------------------------------------------------------
# Parameter preparation: fold BN, merge BN scales into the conv weights.
# ---------------------------------------------------------------------------
def _fold_bn(gamma, beta, mean, var, eps):
    scale = gamma.astype(jnp.float32) / jnp.sqrt(var.astype(jnp.float32) + eps)
    shift = beta.astype(jnp.float32) - mean.astype(jnp.float32) * scale
    return scale, shift


def _prepare_common(params, K, bn_eps):
    C_in = params["dw_w"].shape[0]
    C_out = params["pw_w"].shape[0]
    dw_scale, dw_shift = _fold_bn(params["dw_gamma"], params["dw_beta"],
                                  params["dw_mean"], params["dw_var"], bn_eps)
    pw_scale, pw_shift = _fold_bn(params["pw_gamma"], params["pw_beta"],
                                  params["pw_mean"], params["pw_var"], bn_eps)
    # depthwise (C_in, 1, K, K) -> (K*K, C_in), tap-major, BN scale folded in.
    dw_kc = jnp.transpose(params["dw_w"][:, 0, :, :], (1, 2, 0)).reshape(K * K, C_in)
    dw_kc = dw_kc.astype(jnp.float32) * dw_scale[None, :]
    # pointwise (C_out, C_in, 1, 1) -> (C_in, C_out), BN scale folded into cols.
    pw_w = jnp.transpose(params["pw_w"][:, :, 0, 0], (1, 0)).astype(jnp.float32)
    pw_w = pw_w * pw_scale[None, :]
    return C_in, C_out, dw_kc, pw_w, dw_shift, pw_shift


# ---------------------------------------------------------------------------
# Small cached host-side probes / planners.
# ---------------------------------------------------------------------------
@functools.lru_cache(maxsize=None)
def _roll_is_np_convention():
    """One-off probe of pltpu.roll's shift convention (np.roll-like or inverse)."""
    def kernel(x_ref, o_ref):
        o_ref[...] = pltpu.roll(x_ref[...], 1, axis=1)

    x = jnp.broadcast_to(jnp.arange(128, dtype=jnp.float32), (8, 128))
    y = pl.pallas_call(
        kernel, out_shape=jax.ShapeDtypeStruct((8, 128), jnp.float32))(x)
    first = float(jax.device_get(y)[0, 0])
    if first == 127.0:        # result[i] = x[i - shift]  (np.roll convention)
        return True
    if first == 1.0:          # result[i] = x[i + shift]
        return False
    raise RuntimeError("unexpected pltpu.roll semantics")


@functools.lru_cache(maxsize=None)
def _vmem_capacity_bytes():
    # Narrow, host-side guard only (not hiding kernel failures): if the info
    # query is unavailable, assume the smallest per-core VMEM (v7x, 64 MiB).
    try:
        return int(pltpu.get_tpu_info().vmem_capacity_bytes)
    except Exception:
        return 64 * 1024 * 1024


def _pick_tile_h(h_out, th_cap):
    """Largest multiple-of-8 divisor of h_out <= th_cap (preferred); else h_out
    itself if it fits (full-dim blocks are always layout-legal); else the
    largest divisor <= th_cap (perf only; stores may be masked)."""
    th_cap = max(1, min(h_out, int(th_cap)))
    best8 = 0
    for th in range(8, th_cap + 1, 8):
        if h_out % th == 0:
            best8 = th
    if best8:
        return best8
    if h_out <= th_cap:
        return h_out
    best = 1
    for th in range(1, th_cap + 1):
        if h_out % th == 0:
            best = th
    return best


@functools.lru_cache(maxsize=None)
def _plan(C_in, H, W, C_out, K, stride, padding, dilation, out_dtype_name):
    """Static (cached) path + tile + VMEM-limit planner."""
    S = stride
    Hp, Wp = H + 2 * padding, W + 2 * padding
    H_out = (Hp - dilation * (K - 1) - 1) // S + 1
    W_out = (Wp - dilation * (K - 1) - 1) // S + 1
    out_bytes = jnp.dtype(out_dtype_name).itemsize
    budget = int(0.45 * _vmem_capacity_bytes())   # conservative on v5e/v6e/v7x
    slack = 2 * 1024 * 1024

    if 0 < C_in <= 128 and 128 % C_in == 0:
        G = 128 // C_in
        n_g = -(-W_out // G)
        W_pad = n_g * G
        q_max = (dilation * (K - 1)) // S
        Wq = -(-Wp // S)
        wcp = W_pad * C_in                         # = n_g * 128
        gco = G * C_out
        wcp_out = W_pad * C_out
        L = -(-max(Wq * C_in, wcp + q_max * C_in) // 128) * 128
        fixed = (2 * S * Hp * L * 2                           # input slab (bf16, 2x)
                 + 2 * (K * K * wcp * 4 + wcp * 4             # dw taps + shift
                        + 128 * gco * 2 + wcp_out * 4)        # kron block + pw shift
                 + slack)
        per_th = (2 * wcp_out * out_bytes                     # output block (2x)
                  + 4 * wcp * 4 + 2 * wcp_out * 4 + 2 * L * 4)  # live temporaries
        if budget > fixed:
            th_cap = (budget - fixed) // per_th
            if th_cap >= 1:
                TH = _pick_tile_h(H_out, min(th_cap, 128))
                return ("packed", TH, budget, _roll_is_np_convention())

    # Channels-last fallback sizing.
    fixed = (2 * Hp * Wp * C_in * 2
             + 2 * (K * K * C_in * 4 + C_in * 4 + C_in * C_out * 2 + C_out * 4)
             + slack)
    per_th = (2 * W_out * C_out * out_bytes
              + 4 * W_out * C_in * 4 + 2 * W_out * C_out * 4)
    th_cap = max(1, (budget - fixed) // per_th) if budget > fixed else 1
    TH = _pick_tile_h(H_out, min(th_cap, 128))
    return ("general", TH, budget, True)


# ---------------------------------------------------------------------------
# Fast path: (W, C) packed onto the lane axis, per-128-lane-group pointwise.
# ---------------------------------------------------------------------------
def _dws_kernel_packed(xp_ref, dww_ref, dwb_ref, bmat_ref, pwb_ref, o_ref, *,
                       K, stride, dilation, C_in, TH, n_g, roll_is_np):
    """xp_ref  : (1, S, Hp, L)        bf16 padded input, lane = w*C_in + c
       dww_ref : (K*K, W_pad*C_in)    f32 depthwise taps (BN scale folded), tiled
       dwb_ref : (1, W_pad*C_in)      folded depthwise BN shift
       bmat_ref: (128, G*C_out)       bf16 kron(I_G, W_pw * pw_scale)
       pwb_ref : (1, W_pad*C_out)     folded pointwise BN shift
       o_ref   : (1, TH, W_pad*C_out) lane-dense bf16 output tile
    """
    t = pl.program_id(1)
    L = xp_ref.shape[-1]
    wcp = n_g * 128

    row_base = t * (TH * stride)
    if (TH * stride) % 8 == 0:
        row_base = pl.multiple_of(row_base, 8)

    acc = jnp.zeros((TH, wcp), jnp.float32)
    for kh in range(K):
        row0 = row_base + kh * dilation
        rows_by_phase = {}
        for kw in range(K):
            off = kw * dilation
            phase, q = off % stride, off // stride
            if phase not in rows_by_phase:
                if stride == 1:
                    rows = xp_ref[0, 0, pl.ds(row0, TH), :]
                else:
                    rows = xp_ref[0, phase, pl.ds(row0, TH, stride), :]
                rows_by_phase[phase] = rows.astype(jnp.float32)
            rows = rows_by_phase[phase]
            shift = q * C_in                     # shift left by q packed columns
            if shift:
                amt = (L - shift) if roll_is_np else shift
                rows = pltpu.roll(rows, amt, axis=1)   # XLU slot, off the VALU
            patch = rows[:, :wcp]
            tap = dww_ref[pl.ds(kh * K + kw, 1), :]    # (1, wcp), scale folded
            acc = acc + patch * tap

    # Depthwise BN shift + ReLU (scale already folded into the taps).
    dw = jnp.maximum(acc + dwb_ref[...], 0.0)

    # Pointwise 1x1 conv: one MXU matmul per 128-lane group against a single
    # shared (128, G*C_out) block-diagonal weight; K is exactly the MXU lane
    # depth and the result is already in the lane-dense output layout.
    outs = []
    for g in range(n_g):
        blk = dw[:, g * 128:(g + 1) * 128].astype(jnp.bfloat16)
        outs.append(jnp.dot(blk, bmat_ref[...],
                            preferred_element_type=jnp.float32))
    pw = outs[0] if n_g == 1 else jnp.concatenate(outs, axis=1)
    pw = jnp.maximum(pw + pwb_ref[...], 0.0)
    o_ref[...] = pw.reshape(1, TH, pw.shape[-1]).astype(o_ref.dtype)


def _dws_forward_packed(x_nchw, params, *, kernel_size, stride, padding,
                        dilation, bn_eps, tile_h, vmem_limit, out_dtype,
                        roll_is_np):
    N, C_in, H, W = x_nchw.shape
    K = kernel_size
    _, C_out, dw_kc, pw_w, dw_shift, pw_shift = _prepare_common(params, K, bn_eps)

    S = stride
    Hp, Wp = H + 2 * padding, W + 2 * padding
    H_out = (Hp - dilation * (K - 1) - 1) // S + 1
    W_out = (Wp - dilation * (K - 1) - 1) // S + 1
    TH = tile_h

    G = 128 // C_in
    n_g = -(-W_out // G)
    W_pad = n_g * G
    q_max = (dilation * (K - 1)) // S
    wcp = W_pad * C_in
    gco = G * C_out
    wcp_out = W_pad * C_out

    # NCHW -> NHWC (bf16) -> zero pad -> space-to-depth over W (stride phases)
    # -> pack (W, C) onto the lane axis, lane dim rounded up to 128.
    x = jnp.transpose(x_nchw, (0, 2, 3, 1)).astype(jnp.bfloat16)
    x = jnp.pad(x, ((0, 0), (padding, padding), (padding, padding), (0, 0)))
    Wq = -(-Wp // S)
    if Wq * S != Wp:
        x = jnp.pad(x, ((0, 0), (0, 0), (0, Wq * S - Wp), (0, 0)))
    x = x.reshape(N, Hp, Wq, S, C_in)
    x = jnp.transpose(x, (0, 3, 1, 2, 4)).reshape(N, S, Hp, Wq * C_in)
    L = -(-max(Wq * C_in, wcp + q_max * C_in) // 128) * 128
    if L != Wq * C_in:
        x = jnp.pad(x, ((0, 0), (0, 0), (0, 0), (0, L - Wq * C_in)))

    dww = jnp.tile(dw_kc, (1, W_pad))                           # (K*K, wcp)
    dwb = jnp.tile(dw_shift, W_pad).reshape(1, wcp)
    bmat = jnp.kron(jnp.eye(G, dtype=jnp.float32), pw_w).astype(jnp.bfloat16)
    pwb = jnp.tile(pw_shift, W_pad).reshape(1, wcp_out)

    kernel = functools.partial(
        _dws_kernel_packed, K=K, stride=S, dilation=dilation, C_in=C_in,
        TH=TH, n_g=n_g, roll_is_np=roll_is_np)

    out = pl.pallas_call(
        kernel,
        out_shape=jax.ShapeDtypeStruct((N, H_out, wcp_out), out_dtype),
        grid=(N, H_out // TH),
        in_specs=[
            pl.BlockSpec((1, S, Hp, L), lambda n, t: (n, 0, 0, 0)),
            pl.BlockSpec((K * K, wcp), lambda n, t: (0, 0)),
            pl.BlockSpec((1, wcp), lambda n, t: (0, 0)),
            pl.BlockSpec((128, gco), lambda n, t: (0, 0)),
            pl.BlockSpec((1, wcp_out), lambda n, t: (0, 0)),
        ],
        out_specs=pl.BlockSpec((1, TH, wcp_out), lambda n, t: (n, t, 0)),
        compiler_params=pltpu.CompilerParams(
            dimension_semantics=("parallel", "parallel"),
            vmem_limit_bytes=int(vmem_limit)),
    )(x, dww, dwb, bmat, pwb)

    out = out.reshape(N, H_out, W_pad, C_out)
    if W_pad != W_out:
        out = out[:, :, :W_out, :]
    return jnp.transpose(out, (0, 3, 1, 2))


# ---------------------------------------------------------------------------
# Portable fallback: channels-last (lane = C).  Taken only when C_in does not
# divide 128 or VMEM is too small for the packed layout.
# ---------------------------------------------------------------------------
def _dws_kernel_general(xp_ref, dww_ref, dwb_ref, pww_ref, pwb_ref, o_ref, *,
                        K, stride, dilation, TH, W_out):
    t = pl.program_id(1)
    row_base = t * (TH * stride)
    if (TH * stride) % 8 == 0:
        row_base = pl.multiple_of(row_base, 8)
    C_in = dww_ref.shape[-1]
    acc = jnp.zeros((TH, W_out, C_in), jnp.float32)
    for kh in range(K):
        for kw in range(K):
            h0 = row_base + kh * dilation
            w0 = kw * dilation
            if stride == 1:
                patch = xp_ref[0, pl.ds(h0, TH), pl.ds(w0, W_out), :]
            else:
                patch = xp_ref[0, pl.ds(h0, TH, stride),
                               pl.ds(w0, W_out, stride), :]
            tap = dww_ref[pl.ds(kh * K + kw, 1), :]            # (1, C_in)
            acc = acc + patch.astype(jnp.float32) * tap
    dw = jnp.maximum(acc + dwb_ref[...], 0.0)
    dw2 = dw.reshape(TH * W_out, C_in).astype(jnp.bfloat16)
    pw = jnp.dot(dw2, pww_ref[...], preferred_element_type=jnp.float32)
    pw = jnp.maximum(pw + pwb_ref[...], 0.0)
    o_ref[...] = pw.reshape(1, TH, W_out, o_ref.shape[-1]).astype(o_ref.dtype)


def _dws_forward_general(x_nchw, params, *, kernel_size, stride, padding,
                         dilation, bn_eps, tile_h, vmem_limit, out_dtype):
    N, C_in, H, W = x_nchw.shape
    K = kernel_size
    _, C_out, dw_kc, pw_w, dw_shift, pw_shift = _prepare_common(params, K, bn_eps)

    Hp, Wp = H + 2 * padding, W + 2 * padding
    H_out = (Hp - dilation * (K - 1) - 1) // stride + 1
    W_out = (Wp - dilation * (K - 1) - 1) // stride + 1
    TH = tile_h

    x = jnp.transpose(x_nchw, (0, 2, 3, 1)).astype(jnp.bfloat16)
    x = jnp.pad(x, ((0, 0), (padding, padding), (padding, padding), (0, 0)))

    dwb = dw_shift.reshape(1, C_in)
    pwb = pw_shift.reshape(1, C_out)
    pww = pw_w.astype(jnp.bfloat16)

    kernel = functools.partial(_dws_kernel_general, K=K, stride=stride,
                               dilation=dilation, TH=TH, W_out=W_out)

    out = pl.pallas_call(
        kernel,
        out_shape=jax.ShapeDtypeStruct((N, H_out, W_out, C_out), out_dtype),
        grid=(N, H_out // TH),
        in_specs=[
            pl.BlockSpec((1, Hp, Wp, C_in), lambda n, t: (n, 0, 0, 0)),
            pl.BlockSpec((K * K, C_in), lambda n, t: (0, 0)),
            pl.BlockSpec((1, C_in), lambda n, t: (0, 0)),
            pl.BlockSpec((C_in, C_out), lambda n, t: (0, 0)),
            pl.BlockSpec((1, C_out), lambda n, t: (0, 0)),
        ],
        out_specs=pl.BlockSpec((1, TH, W_out, C_out), lambda n, t: (n, t, 0, 0)),
        compiler_params=pltpu.CompilerParams(
            dimension_semantics=("parallel", "parallel"),
            vmem_limit_bytes=int(vmem_limit)),
    )(x, dw_kc, dwb, pww, pwb)

    return jnp.transpose(out, (0, 3, 1, 2))


# ---------------------------------------------------------------------------
# Public entry point: cached jitted forward per static config, no per-call sync.
# ---------------------------------------------------------------------------
@functools.lru_cache(maxsize=None)
def _build_forward(key):
    (path, TH, vmem_limit, roll_np, K, stride, padding,
     dilation, bn_eps, out_dtype_name) = key
    common = dict(kernel_size=K, stride=stride, padding=padding,
                  dilation=dilation, bn_eps=bn_eps, tile_h=TH,
                  vmem_limit=vmem_limit, out_dtype=jnp.dtype(out_dtype_name))
    if path == "packed":
        fn = functools.partial(_dws_forward_packed, roll_is_np=roll_np, **common)
    else:
        fn = functools.partial(_dws_forward_general, **common)
    return jax.jit(fn)


def dws_conv_block(x_nchw, params, *, kernel_size=3, stride=1, padding=1,
                   dilation=1, bn_eps=1e-5, out_dtype=jnp.bfloat16):
    """Pallas implementation of DwsConvBlock.forward (NCHW in, NCHW out)."""
    N, C_in, H, W = x_nchw.shape
    C_out = params["pw_w"].shape[0]
    out_name = jnp.dtype(out_dtype).name
    path, TH, vmem_limit, roll_np = _plan(C_in, H, W, C_out, kernel_size,
                                          stride, padding, dilation, out_name)
    fwd = _build_forward((path, TH, vmem_limit, roll_np, kernel_size, stride,
                          padding, dilation, float(bn_eps), out_name))
    return fwd(x_nchw, params)


# ---------------------------------------------------------------------------
# Pure-JAX (XLA conv) f32 reference for correctness checking.
# ---------------------------------------------------------------------------
def _reference_forward(x_nchw, params, *, stride, padding, dilation, bn_eps):
    def bn(y, g, b, m, v):
        g = g[None, :, None, None]; b = b[None, :, None, None]
        m = m[None, :, None, None]; v = v[None, :, None, None]
        return (y - m) / jnp.sqrt(v + bn_eps) * g + b

    dw = lax.conv_general_dilated(
        x_nchw, params["dw_w"], window_strides=(stride, stride),
        padding=[(padding, padding), (padding, padding)],
        rhs_dilation=(dilation, dilation),
        feature_group_count=x_nchw.shape[1],
        dimension_numbers=("NCHW", "OIHW", "NCHW"))
    dw = jnp.maximum(bn(dw, params["dw_gamma"], params["dw_beta"],
                        params["dw_mean"], params["dw_var"]), 0.0)
    pw = lax.conv_general_dilated(
        dw, params["pw_w"], window_strides=(1, 1), padding=[(0, 0), (0, 0)],
        dimension_numbers=("NCHW", "OIHW", "NCHW"))
    pw = jnp.maximum(bn(pw, params["pw_gamma"], params["pw_beta"],
                        params["pw_mean"], params["pw_var"]), 0.0)
    return pw


if __name__ == "__main__":
    # DwsConvBlock(16, 32, kernel_size=3, stride=1, padding=1), small shapes.
    N, C_IN, H, W = 2, 16, 16, 16
    C_OUT, K, STRIDE, PAD, DIL = 32, 3, 1, 1, 1
    BN_EPS = 1e-5

    root = jax.random.PRNGKey(0)
    ks = jax.random.split(root, 11)

    x = jax.random.normal(ks[0], (N, C_IN, H, W), dtype=jnp.float32)
    params = {
        # depthwise conv: (C_in, 1, K, K), groups = C_in, no bias
        "dw_w": 0.3 * jax.random.normal(ks[1], (C_IN, 1, K, K), jnp.float32),
        "dw_gamma": jax.random.uniform(ks[2], (C_IN,), jnp.float32, 0.75, 1.25),
        "dw_beta": 0.1 * jax.random.normal(ks[3], (C_IN,), jnp.float32),
        "dw_mean": 0.1 * jax.random.normal(ks[4], (C_IN,), jnp.float32),
        "dw_var": jax.random.uniform(ks[5], (C_IN,), jnp.float32, 0.75, 1.25),
        # pointwise conv: (C_out, C_in, 1, 1), no bias
        "pw_w": 0.3 * jax.random.normal(ks[6], (C_OUT, C_IN, 1, 1), jnp.float32),
        "pw_gamma": jax.random.uniform(ks[7], (C_OUT,), jnp.float32, 0.75, 1.25),
        "pw_beta": 0.1 * jax.random.normal(ks[8], (C_OUT,), jnp.float32),
        "pw_mean": 0.1 * jax.random.normal(ks[9], (C_OUT,), jnp.float32),
        "pw_var": jax.random.uniform(ks[10], (C_OUT,), jnp.float32, 0.75, 1.25),
    }

    out = dws_conv_block(x, params, kernel_size=K, stride=STRIDE, padding=PAD,
                         dilation=DIL, bn_eps=BN_EPS)
    out = jax.block_until_ready(out)

    ref = _reference_forward(x, params, stride=STRIDE, padding=PAD,
                             dilation=DIL, bn_eps=BN_EPS)
    ref = jax.block_until_ready(ref)

    assert out.shape == (N, C_OUT, H, W), out.shape
    # bf16 activations, bf16 MXU operands and bf16 output (f32 accumulation)
    # => relaxed tolerance vs the f32 XLA reference.
    np.testing.assert_allclose(np.asarray(out.astype(jnp.float32)),
                               np.asarray(ref), rtol=5e-2, atol=5e-2)
    print("KERNEL_OK")
</pallas_src>

<mosaic_0001>
module attributes {stable_mosaic.version = 11 : i64} {
  func.func @kernel(%arg0: memref<8x128xf32, #tpu.memory_space<vmem>>, %arg1: memref<8x128xf32, #tpu.memory_space<vmem>>) attributes {dimension_semantics = [], scalar_prefetch = 0 : i64, scratch_operands = 0 : i64, tpu.core_type = #tpu.core_type<tc>} {
    %c0 = arith.constant 0 : index
    %c0_0 = arith.constant 0 : index
    %0 = vector.load %arg0[%c0, %c0_0] : memref<8x128xf32, #tpu.memory_space<vmem>>, vector<8x128xf32>
    %c1_i32 = arith.constant 1 : i32
    %1 = tpu.dynamic_rotate %0 by %c1_i32 dim 1 : vector<8x128xf32>, i32 -> vector<8x128xf32>
    %c0_1 = arith.constant 0 : index
    %c0_2 = arith.constant 0 : index
    %2 = vector.load %arg1[%c0_1, %c0_2] : memref<8x128xf32, #tpu.memory_space<vmem>>, vector<8x128xf32>
    tpu.vector_store %arg1[%c0_1, %c0_2], %1 {strides = array<i32>} : memref<8x128xf32, #tpu.memory_space<vmem>>, vector<8x128xf32>,
    return
  }
}

</mosaic_0001>

<llo_original>
// kernel: tpu_custom_call.1
$region0: #{tpu_custom_call.1}
  #allocation0 [shape = 'u32[]', space=smem, size = 0x4, offset = 0x4, fixed_abs, tag = 'smem constant byte address 0x4 - core index']
  #allocation1 [shape = 'u32[144,128]{1,0:T(1,128)}', space=vmem, size = 0x12000, scoped, tag = 'internal scratch']
  %s0 = inlined_call_operand.hbm [shape: f32[8,128], index: 0, kind: input, shape index: {}]
  %s1 = inlined_call_operand.hbm [shape: f32[8,128], index: 1, kind: output, shape index: {}]
  %s2 = sld [smem:[#allocation0]]
  $region18: #{tpu_custom_call.1} parent=0
    _
  %s4 = ssub.s32 1, %s2
  %s5 = scalar_select 0, %s4, %s2
  $region1: #{tpu_custom_call.1} parent=0
    #allocation2 [shape = 'u8[4096]{0}', space=vmem, size = 0x1000, scoped, tag = 'input window, operand 0, single buffered']
    #allocation3 [shape = 's32[1]{0}', space=sflag, size = 0x4, scoped, tag = 'scoped memory for tpu_custom_call.1']
    #allocation4 [shape = 's32[1]{0}', space=sflag, size = 0x4, scoped, tag = 'scoped memory for tpu_custom_call.1']
    #allocation5 [shape = 'u8[4096]{0}', space=vmem, size = 0x1000, scoped, tag = 'output window, operand 0, single buffered']
    %6 = vsyncpa [#allocation3], 0
    %7 = vsyncpa [#allocation4], 0
    // Predicated region
    $region2: #{tpu_custom_call.1} parent=1 // pred_check
      _
    $region3: #{tpu_custom_call.1} parent=1 // pred_check_branch
      %9 = sbr.rel (0) target = $region5
    $region4: #{tpu_custom_call.1} parent=1 // pred_region
      %s11 = ssub.s32 128, 128
      %12 = vsyncadd [#allocation3], %s11
      %s14 = sshll.u32 [#allocation2], 4
      %s15 = int_to_ptr.vmem [resolvable:$true] %s14
      %17 = dma.hbm_to_vmem [thread:$0]  %s0, 128, %s15, [#allocation3]
    $region5: #{tpu_custom_call.1} parent=1 // pred_fallthru
      _
    // Predicated region
    $region6: #{tpu_custom_call.1} parent=1 // pred_check
      _
    $region7: #{tpu_custom_call.1} parent=1 // pred_check_branch
      %19 = sbr.rel (0) target = $region9
    $region8: #{tpu_custom_call.1} parent=1 // pred_region
      %20 = dma.done [#allocation3], 128
    $region9: #{tpu_custom_call.1} parent=1 // pred_fallthru
      _
    %v21 = vld [vmem:[#allocation2] sm:$0xff]
    %22 = vrot.lane.b32.xlu0 %v21, 1
    %v23 = vpop.permute.xlu0 %22
    %24 = vst [vmem:[#allocation5] sm:$0xff] %v23
    // Predicated region
    $region10: #{tpu_custom_call.1} parent=1 // pred_check
      _
    $region11: #{tpu_custom_call.1} parent=1 // pred_check_branch
      %26 = sbr.rel (0) target = $region13
    $region12: #{tpu_custom_call.1} parent=1 // pred_region
      %s28 = ssub.s32 128, 128
      %29 = vsyncadd [#allocation4], %s28
      %s31 = sshll.u32 [#allocation5], 4
      %s32 = int_to_ptr.vmem [resolvable:$true] %s31
      %34 = dma.vmem_to_hbm [thread:$0]  %s32, 128, %s1, [#allocation4]
    $region13: #{tpu_custom_call.1} parent=1 // pred_fallthru
      _
    // Predicated region
    $region14: #{tpu_custom_call.1} parent=1 // pred_check
      _
    $region15: #{tpu_custom_call.1} parent=1 // pred_check_branch
      %36 = sbr.rel (0) target = $region17
    $region16: #{tpu_custom_call.1} parent=1 // pred_region
      %37 = dma.done [#allocation4], 128
    $region17: #{tpu_custom_call.1} parent=1 // pred_fallthru
      _
    %38 = vsyncpa [#allocation3], 1
    %39 = vsyncpa [#allocation4], 1

</llo_original>
